<compile_context>
chip_gen: v7x
topology: tpu7x:2x2x1
jax: 0.10.0
libtpu: 0.0.40
codegen_flags: <defaults>
</compile_context>

<pallas_src>
import math
from typing import NamedTuple

import jax
import jax.numpy as jnp
from jax.experimental import pallas as pl
from jax.experimental.pallas import tpu as pltpu

_MIB = 1024 * 1024
_PE_RESIDENT_MAX_BYTES = 4 * _MIB


# --------------------------------------------------------------------------- #
# Kernel body
# --------------------------------------------------------------------------- #
def _pe_add_kernel(x_ref, pe_ref, o_ref):
    # x_ref / o_ref: (TR, L) blocks (batch dim squeezed).
    # pe_ref: either the matching (TR, L) tile, or the full VMEM-resident
    # (R_pad, L) table (then slice the rows for this grid step in-VMEM).
    tr = x_ref.shape[0]
    if pe_ref.shape[0] == tr:           # trace-time branch (static shapes)
        pe = pe_ref[...]
    else:
        start = pl.multiple_of(pl.program_id(0) * tr, tr)
        pe = pe_ref[pl.ds(start, tr), :]
    o_ref[...] = (x_ref[...] + pe).astype(o_ref.dtype)


# --------------------------------------------------------------------------- #
# __init__-time table (identical semantics to the PyTorch module)
# --------------------------------------------------------------------------- #
def positional_encoding_table(d_model: int, max_len: int) -> jnp.ndarray:
    position = jnp.arange(max_len, dtype=jnp.float32)[:, None]            # (L, 1)
    div_term = jnp.exp(
        jnp.arange(0, d_model, 2, dtype=jnp.float32) * (-math.log(10000.0) / d_model)
    )
    args = position * div_term                                            # (L, ceil(D/2))
    pe = jnp.zeros((max_len, d_model), dtype=jnp.float32)
    pe = pe.at[:, 0::2].set(jnp.sin(args))
    if d_model % 2 == 0:
        pe = pe.at[:, 1::2].set(jnp.cos(args))
    else:
        pe = pe.at[:, 1::2].set(jnp.cos(args)[:, : d_model // 2])
    return pe


# --------------------------------------------------------------------------- #
# Layout / tiling helpers
# --------------------------------------------------------------------------- #
def _vmem_capacity_bytes() -> int:
    try:
        return int(pltpu.get_tpu_info().vmem_capacity_bytes)
    except Exception:
        return 64 * _MIB   # conservative default (v7x per-TC VMEM)


def _default_target_block_bytes() -> int:
    # ~1/16th of physical VMEM per pipelined block: 4 MiB on v7x (64 MiB/TC),
    # capped at 6 MiB on v5e/v6e (128 MiB).  v5e is HBM-bound regardless.
    cap = _vmem_capacity_bytes()
    return int(max(2 * _MIB, min(6 * _MIB, cap // 16)))


def _choose_lane_layout(S: int, D: int):
    """View (S, D) as (R, L) with L a multiple of 128 when the sizes allow it."""
    N = S * D
    if N % 128 == 0:
        for L in (2048, 1024, 512, 256, 128):
            if N % L == 0:
                return N // L, L
    # Fallback: keep (S, D); block last dim == full array dim is always legal.
    # TODO(synk): odd d_model (e.g. 33) forces masked stores; the real fix is a
    # lane-friendly d_model upstream or fusing this add into the adjacent kernel.
    return S, D


def _choose_row_tile(R: int, L: int, itemsize: int, target_bytes: int) -> int:
    """Row tile TR: multiple of the packed-sublane count (or == R), ~target_bytes
    per block, and split in two when the whole plane would fit in one block so
    both v7x TensorCores get work."""
    mult = max(8, 32 // itemsize)               # 8 f32, 16 bf16, 32 int8/fp8
    rows = max(1, target_bytes // (L * itemsize))
    if rows < R:
        rows = max(mult, (rows // mult) * mult)
    elif R >= 2 * mult:
        rows = ((-(-R // 2) + mult - 1) // mult) * mult   # ceil(R/2) -> mult
    if rows >= R:
        return R
    return rows


# --------------------------------------------------------------------------- #
# One-time preparation (hoists slice/cast/reshape out of the forward pass)
# --------------------------------------------------------------------------- #
class PreparedPE(NamedTuple):
    table: jnp.ndarray     # (num_r * TR, L) dtype-matched, row-padded pe plane
    seq_len: int
    d_model: int
    R: int                 # unpadded rows of the (R, L) view (R * L == S * D)
    L: int
    TR: int                # row tile
    num_r: int
    resident: bool         # pe kept VMEM-resident (full-array BlockSpec)


def prepare_positional_encoding(pe, seq_len, dtype=jnp.float32,
                                *, target_block_bytes=None) -> PreparedPE:
    max_len, d_model = pe.shape
    assert seq_len <= max_len
    itemsize = jnp.dtype(dtype).itemsize
    if target_block_bytes is None:
        target_block_bytes = _default_target_block_bytes()

    R, L = _choose_lane_layout(seq_len, d_model)
    TR = _choose_row_tile(R, L, itemsize, target_block_bytes)
    num_r = int(pl.cdiv(R, TR))

    # NOTE: casting pe to the activation dtype here differs from PyTorch's
    # fp32 promotion for bf16 activations; benign for positional encodings.
    pe_plane = pe[:seq_len].astype(dtype).reshape(R, L)
    r_pad = num_r * TR
    if r_pad != R:
        pe_plane = jnp.pad(pe_plane, ((0, r_pad - R), (0, 0)))

    resident = (r_pad * L * itemsize) <= _PE_RESIDENT_MAX_BYTES
    return PreparedPE(pe_plane, seq_len, d_model, R, L, TR, num_r, resident)


# --------------------------------------------------------------------------- #
# Forward pass
# --------------------------------------------------------------------------- #
def positional_encoding_forward(x: jnp.ndarray, prep: PreparedPE,
                                *, donate_x: bool = False) -> jnp.ndarray:
    """x: (B, S, D). Returns x + pe[:S] broadcast over batch."""
    B, S, D = x.shape
    assert S == prep.seq_len and D == prep.d_model
    assert x.dtype == prep.table.dtype

    R, L, TR, num_r = prep.R, prep.L, prep.TR, prep.num_r
    itemsize = jnp.dtype(x.dtype).itemsize
    x_r = x.reshape(B, R, L)

    block_bytes = TR * L * itemsize
    pe_bytes = prep.table.size * itemsize

    if prep.resident:
        # pe DMA'd once, lives in VMEM for the whole kernel; only x/out are
        # double-buffered per step.
        pipelined_bytes = 4 * block_bytes + pe_bytes
        pe_spec = pl.BlockSpec((prep.table.shape[0], L), lambda r, b: (0, 0))
        dims = ("parallel", "parallel")
    else:
        pipelined_bytes = 6 * block_bytes
        pe_spec = pl.BlockSpec((TR, L), lambda r, b: (r, 0))
        # Batch is the FAST grid axis and kept "arbitrary": pe's block index is
        # constant across it, so the pipeliner fetches each pe tile only once.
        dims = ("parallel", "arbitrary")

    cap = _vmem_capacity_bytes()
    vmem_limit = int(min(max(pipelined_bytes + 2 * _MIB, 8 * _MIB), (3 * cap) // 4))

    out_r = pl.pallas_call(
        _pe_add_kernel,
        out_shape=jax.ShapeDtypeStruct((B, R, L), x.dtype),
        grid=(num_r, B),
        in_specs=[
            pl.BlockSpec((pl.Squeezed(), TR, L), lambda r, b: (b, r, 0)),   # x
            pe_spec,                                                        # pe
        ],
        out_specs=pl.BlockSpec((pl.Squeezed(), TR, L), lambda r, b: (b, r, 0)),
        compiler_params=pltpu.CompilerParams(
            dimension_semantics=dims,
            vmem_limit_bytes=vmem_limit,
        ),
        # Only safe if the caller no longer needs x afterwards.
        input_output_aliases=({0: 0} if donate_x else {}),
    )(x_r, prep.table)

    return out_r.reshape(B, S, D)


# --------------------------------------------------------------------------- #
# Demo / self-test
# --------------------------------------------------------------------------- #
if __name__ == "__main__":
    key = jax.random.PRNGKey(0)
    k0, k1, k2 = jax.random.split(key, 3)

    # Main case: S*D divisible by 128 -> lane-dense (R, L) layout, resident pe.
    d_model, max_len, batch, seq = 32, 16, 2, 8
    pe = positional_encoding_table(d_model, max_len)
    x = jax.random.normal(k0, (batch, seq, d_model), dtype=jnp.float32)
    prep = prepare_positional_encoding(pe, seq, jnp.float32)
    out = jax.block_until_ready(positional_encoding_forward(x, prep))
    ref = x + pe[None, :seq, :]
    assert out.shape == (batch, seq, d_model)
    assert out.dtype == x.dtype
    assert jnp.allclose(out, ref, atol=1e-6, rtol=1e-6)

    # Secondary case: odd d_model + S*D not a multiple of 128 -> fallback layout.
    d2, ml2, b2, s2 = 33, 10, 3, 6
    pe2 = positional_encoding_table(d2, ml2)
    x2 = jax.random.normal(k1, (b2, s2, d2), dtype=jnp.float32)
    prep2 = prepare_positional_encoding(pe2, s2, jnp.float32)
    out2 = jax.block_until_ready(positional_encoding_forward(x2, prep2))
    assert jnp.allclose(out2, x2 + pe2[None, :s2, :], atol=1e-6, rtol=1e-6)

    # Third case: multiple row tiles -> exercises the resident-pe in-kernel slice
    # and the >=2-row-tile split for v7x megacore.
    d3, ml3, b3, s3 = 128, 512, 2, 512
    pe3 = positional_encoding_table(d3, ml3)
    x3 = jax.random.normal(k2, (b3, s3, d3), dtype=jnp.float32)
    prep3 = prepare_positional_encoding(pe3, s3, jnp.float32)
    out3 = jax.block_until_ready(positional_encoding_forward(x3, prep3))
    assert jnp.allclose(out3, x3 + pe3[None, :s3, :], atol=1e-5, rtol=1e-5)

    print("KERNEL_OK")
</pallas_src>

<mosaic_0001>
module attributes {stable_mosaic.version = 11 : i64} {
  func.func @_pe_add_kernel(%arg0: i32, %arg1: i32, %arg2: memref<1x1x256xf32, #tpu.memory_space<vmem>>, %arg3: memref<1x256xf32, #tpu.memory_space<vmem>>, %arg4: memref<1x1x256xf32, #tpu.memory_space<vmem>>) attributes {dimension_semantics = [#tpu.dimension_semantics<parallel>, #tpu.dimension_semantics<parallel>], iteration_bounds = array<i64: 1, 2>, scalar_prefetch = 0 : i64, scratch_operands = 0 : i64, tpu.core_type = #tpu.core_type<tc>, window_params = [{transform_indices = @transform_0, window_bounds = array<i64: 1, 1, 256>}, {pipeline_mode = #tpu.pipeline_mode<synchronous>, transform_indices = @transform_1, window_bounds = array<i64: 1, 256>}, {transform_indices = @transform_2, window_bounds = array<i64: 1, 1, 256>}]} {
    %c0 = arith.constant 0 : index
    %c0_0 = arith.constant 0 : index
    %0 = vector.load %arg3[%c0, %c0_0] : memref<1x256xf32, #tpu.memory_space<vmem>>, vector<1x256xf32>
    %c0_1 = arith.constant 0 : index
    %c0_2 = arith.constant 0 : index
    %c0_3 = arith.constant 0 : index
    %1 = vector.load %arg2[%c0_1, %c0_2, %c0_3] : memref<1x1x256xf32, #tpu.memory_space<vmem>>, vector<1x1x256xf32>
    %2 = vector.shape_cast %1 : vector<1x1x256xf32> to vector<1x256xf32>
    %3 = arith.addf %2, %0 : vector<1x256xf32>
    %c0_4 = arith.constant 0 : index
    %c0_5 = arith.constant 0 : index
    %c0_6 = arith.constant 0 : index
    %4 = vector.load %arg4[%c0_4, %c0_5, %c0_6] : memref<1x1x256xf32, #tpu.memory_space<vmem>>, vector<1x1x256xf32>
    %5 = vector.shape_cast %4 : vector<1x1x256xf32> to vector<1x256xf32>
    %6 = vector.shape_cast %3 : vector<1x256xf32> to vector<1x1x256xf32>
    tpu.vector_store %arg4[%c0_4, %c0_5, %c0_6], %6 {strides = array<i32>} : memref<1x1x256xf32, #tpu.memory_space<vmem>>, vector<1x1x256xf32>,
    return
  }
  func.func @transform_0(%arg0: i32, %arg1: i32) -> (i32, i32, i32) {
    %c0_i32 = arith.constant 0 : i32
    %c0_i32_0 = arith.constant 0 : i32
    return %arg1, %arg0, %c0_i32 : i32, i32, i32
  }
  func.func @transform_1(%arg0: i32, %arg1: i32) -> (i32, i32) {
    %c0_i32 = arith.constant 0 : i32
    %c0_i32_0 = arith.constant 0 : i32
    %c0_i32_1 = arith.constant 0 : i32
    return %c0_i32, %c0_i32_0 : i32, i32
  }
  func.func @transform_2(%arg0: i32, %arg1: i32) -> (i32, i32, i32) {
    %c0_i32 = arith.constant 0 : i32
    %c0_i32_0 = arith.constant 0 : i32
    return %arg1, %arg0, %c0_i32 : i32, i32, i32
  }
}

</mosaic_0001>

<llo_original>
// kernel: tpu_custom_call.1
$region0: #{tpu_custom_call.1}
  #allocation0 [shape = 'u32[]', space=smem, size = 0x4, offset = 0x4, fixed_abs, tag = 'smem constant byte address 0x4 - core index']
  #allocation1 [shape = 'u32[144,128]{1,0:T(1,128)}', space=vmem, size = 0x12000, scoped, tag = 'internal scratch']
  %s0 = inlined_call_operand.hbm [shape: f32[2,1,256], index: 0, kind: input, shape index: {}]
  %s1 = inlined_call_operand.vmem [shape: f32[1,256], index: 1, kind: input, shape index: {}]
  %s2 = inlined_call_operand.hbm [shape: f32[2,1,256], index: 2, kind: output, shape index: {}]
  %s3 = sld [smem:[#allocation0]]
  $region45: #{tpu_custom_call.1} parent=0
    _
  %s5 = ssub.s32 1, %s3
  %s6 = scalar_select 0, %s5, %s3
  $region1: #{tpu_custom_call.1} parent=0
    #allocation2 [shape = 'u8[2048]{0}', space=vmem, size = 0x800, scoped, tag = 'input window, operand 0']
    #allocation3 [shape = 's32[2]{0}', space=sflag, size = 0x8, scoped, tag = 'scoped memory for tpu_custom_call.1']
    #allocation4 [shape = 's32[2]{0}', space=sflag, size = 0x8, scoped, tag = 'scoped memory for tpu_custom_call.1']
    #allocation5 [shape = 'u8[2048]{0}', space=vmem, size = 0x800, scoped, tag = 'output window, operand 0']
    %7 = vsyncpa [#allocation3], 0
    %s8 = scalar_lea.sflag [#allocation3], 1
    %9 = vsyncpa %s8, 0
    %10 = vsyncpa [#allocation4], 0
    %s11 = scalar_lea.sflag [#allocation4], 1
    %12 = vsyncpa %s11, 0
    loop: start=0, step=1, limit=4
    $region2: #{tpu_custom_call.1} parent=1 // loop_pre_header
      _
    $region3: #{tpu_custom_call.1} parent=1 // loop_header
      %s14 = sphi 0, %s18
      %p15 = scmp.ge.s32.totalorder %s14, 4
      %s21 = sphi 0, %s33
      %s22 = sphi 0, %s29
      %s23 = sphi 0, %s21
      %s24 = sphi 0, %s22
      %s25 = sphi 0, %s23
      %s26 = sphi 0, %s24
      %s38 = sphi 0, %s40
      %s41 = sphi 0, %s38
      %s42 = sphi 0, %s41
      %s58 = sphi 0, %s42
      %s62 = sphi 0, %s62
      %s64 = sphi 0, %s62
      %s65 = sphi 0, %s64
      %s79 = sphi 0, %s65
      %s87 = sphi 0, %s89
      %s90 = sphi 0, %s87
      %s91 = sphi 0, %s90
      %s107 = sphi 0, %s91
    $region4: #{tpu_custom_call.1} parent=1 // loop_header_branch
      %17 = sbr.rel (%p15) target = $region8
    $region5: #{tpu_custom_call.1} parent=1 // loop_body
      %s19 = ssub.s32 %s14, 1
      %s20 = ssub.s32 %s14, 2
      %s27 = sadd.s32 1, %s22
      %p28 = scmp.ge.s32.totalorder %s27, 2
      %s29 = scalar_select %p28, 0, %s27
      %s30 = sadd.s32 1, %s21
      %s31 = scalar_select %p28, %s30, %s21
      %p32 = scmp.ge.s32.totalorder %s31, 1
      %s33 = scalar_select %p32, 0, %s31
      %s34 = ssub.s32 %s22, %s29
      %s35 = ssub.s32 %s21, %s33
      %s36 = sor.u32 %s34, %s35
      %p37 = scmp.eq.s32.totalorder %s36, 0
      %s39 = sadd.s32 %s38, 1
      %s40 = scalar_select %p37, %s38, %s39
      %p43 = pneg %p37
      %p44 = scmp.eq.s32.totalorder %s14, 1
      %p45 = por %p43, %p44
      %p46 = scmp.ne.s32.totalorder %s38, %s41
      %p47 = scmp.eq.s32.totalorder %s14, 0
      %p48 = por %p46, %p47
      %p49 = scmp.ne.s32.totalorder %s38, %s41
      %p50 = scmp.eq.s32.totalorder %s19, 1
      %p51 = por %p49, %p50
      %p52 = scmp.ne.s32.totalorder %s41, %s42
      %p53 = scmp.eq.s32.totalorder %s19, 0
      %p54 = por %p52, %p53
      %p55 = scmp.ne.s32.totalorder %s41, %s42
      %p56 = scmp.eq.s32.totalorder %s20, 1
      %p57 = por %p55, %p56
      %p59 = scmp.ne.s32.totalorder %s42, %s58
      %p60 = scmp.eq.s32.totalorder %s20, 0
      %p61 = por %p59, %p60
      %s63 = sadd.s32 %s62, 1
      %p66 = scmp.eq.s32.totalorder %s14, 1
      %p67 = scmp.ne.s32.totalorder %s62, %s64
      %p68 = scmp.eq.s32.totalorder %s14, 0
      %p69 = por %p67, %p68
      %p70 = scmp.ne.s32.totalorder %s62, %s64
      %p71 = scmp.eq.s32.totalorder %s19, 1
      %p72 = por %p70, %p71
      %p73 = scmp.ne.s32.totalorder %s64, %s65
      %p74 = scmp.eq.s32.totalorder %s19, 0
      %p75 = por %p73, %p74
      %p76 = scmp.ne.s32.totalorder %s64, %s65
      %p77 = scmp.eq.s32.totalorder %s20, 1
      %p78 = por %p76, %p77
      %p80 = scmp.ne.s32.totalorder %s65, %s79
      %p81 = scmp.eq.s32.totalorder %s20, 0
      %p82 = por %p80, %p81
      %s83 = ssub.s32 %s22, %s29
      %s84 = ssub.s32 %s21, %s33
      %s85 = sor.u32 %s83, %s84
      %p86 = scmp.eq.s32.totalorder %s85, 0
      %s88 = sadd.s32 %s87, 1
      %s89 = scalar_select %p86, %s87, %s88
      %p92 = pneg %p86
      %p93 = scmp.eq.s32.totalorder %s14, 1
      %p94 = por %p92, %p93
      %p95 = scmp.ne.s32.totalorder %s87, %s90
      %p96 = scmp.eq.s32.totalorder %s14, 0
      %p97 = por %p95, %p96
      %p98 = scmp.ne.s32.totalorder %s87, %s90
      %p99 = scmp.eq.s32.totalorder %s19, 1
      %p100 = por %p98, %p99
      %p101 = scmp.ne.s32.totalorder %s90, %s91
      %p102 = scmp.eq.s32.totalorder %s19, 0
      %p103 = por %p101, %p102
      %p104 = scmp.ne.s32.totalorder %s90, %s91
      %p105 = scmp.eq.s32.totalorder %s20, 1
      %p106 = por %p104, %p105
      %p108 = scmp.ne.s32.totalorder %s91, %s107
      %p109 = scmp.eq.s32.totalorder %s20, 0
      %p110 = por %p108, %p109
      %p111 = scmp.le.s32.totalorder 1, %s14
      %p112 = scmp.lt.s32.totalorder %s14, 3
      %p113 = pnand %p111, %p112
      %p114 = pneg %p113
      // Predicated region
      $region9: #{tpu_custom_call.1} parent=5 // pred_check
        _
      $region10: #{tpu_custom_call.1} parent=5 // pred_check_branch
        %116 = sbr.rel (%p113) target = $region12
      $region11: #{tpu_custom_call.1} parent=5 // pred_region
        %s117 = ssub.s32 %s14, 1
        // Predicated region
        $region13: #{tpu_custom_call.1} parent=11 // pred_check
          %p118 = pneg %p75
        $region14: #{tpu_custom_call.1} parent=11 // pred_check_branch
          %120 = sbr.rel (%p118) target = $region16
        $region15: #{tpu_custom_call.1} parent=11 // pred_region
          _
        $region16: #{tpu_custom_call.1} parent=11 // pred_fallthru
          _
      $region12: #{tpu_custom_call.1} parent=5 // pred_fallthru
        _
      %p121 = scmp.lt.s32.totalorder %s14, 2
      // Predicated region
      $region17: #{tpu_custom_call.1} parent=5 // pred_check
        %p122 = pneg %p121
      $region18: #{tpu_custom_call.1} parent=5 // pred_check_branch
        %124 = sbr.rel (%p122) target = $region20
      $region19: #{tpu_custom_call.1} parent=5 // pred_region
        // Predicated region
        $region21: #{tpu_custom_call.1} parent=19 // pred_check
          %p125 = pneg %p48
        $region22: #{tpu_custom_call.1} parent=19 // pred_check_branch
          %127 = sbr.rel (%p125) target = $region24
        $region23: #{tpu_custom_call.1} parent=19 // pred_region
          %s128 = sand.u32 %s38, 1
          %s129 = scalar_lea.sflag [#allocation3], %s128
          %s130 = sand.u32 %s38, 1
          %s131 = smul.addr %s130, 2
          %s132 = scalar_lea.vmem [#allocation2], %s131
          %s134 = ssub.s32 32, 32
          %135 = vsyncadd %s129, %s134
          %s136 = smul.addr %s21, 2
          %s137 = smul.addr %s22, 2
          %s138 = sadd.s32 %s136, %s137
          %s139 = smul.addr %s138, 16
          %s140 = scalar_lea.hbm %s0, %s139
          %s142 = sshll.u32 %s132, 4
          %s143 = int_to_ptr.vmem [resolvable:$true] %s142
          %145 = dma.hbm_to_vmem [thread:$0]  %s140, 32, %s143, %s129
        $region24: #{tpu_custom_call.1} parent=19 // pred_fallthru
          _
      $region20: #{tpu_custom_call.1} parent=5 // pred_fallthru
        _
      %p146 = scmp.le.s32.totalorder 1, %s14
      %p147 = scmp.lt.s32.totalorder %s14, 3
      %p148 = pnand %p146, %p147
      %p149 = pneg %p148
      // Predicated region
      $region25: #{tpu_custom_call.1} parent=5 // pred_check
        _
      $region26: #{tpu_custom_call.1} parent=5 // pred_check_branch
        %151 = sbr.rel (%p148) target = $region28
      $region27: #{tpu_custom_call.1} parent=5 // pred_region
        %s152 = ssub.s32 %s14, 1
        %s153 = sand.u32 %s41, 1
        %s154 = scalar_lea.sflag [#allocation3], %s153
        %s155 = sand.u32 %s41, 1
        %s156 = smul.addr %s155, 2
        %s157 = scalar_lea.vmem [#allocation2], %s156
        // Predicated region
        $region29: #{tpu_custom_call.1} parent=27 // pred_check
          %p158 = pneg %p54
        $region30: #{tpu_custom_call.1} parent=27 // pred_check_branch
          %160 = sbr.rel (%p158) target = $region32
        $region31: #{tpu_custom_call.1} parent=27 // pred_region
          %161 = dma.done %s154, 32
        $region32: #{tpu_custom_call.1} parent=27 // pred_fallthru
          _
        %s162 = sand.u32 %s41, 1
        %s163 = scalar_lea.sflag [#allocation3], %s162
        %s164 = sand.u32 %s41, 1
        %s165 = smul.addr %s164, 2
        %s166 = scalar_lea.vmem [#allocation2], %s165
        %p167 = pneg %p54
        %p168 = pneg %p51
        %p169 = pneg %p75
        %p170 = pneg %p72
        %p171 = pneg %p103
        %p172 = pneg %p100
        %s173 = sand.u32 %s90, 1
        %s174 = scalar_lea.sflag [#allocation4], %s173
        %s175 = sand.u32 %s90, 1
        %s176 = smul.addr %s175, 2
        %s177 = scalar_lea.vmem [#allocation5], %s176
        %v178 = vld [vmem:[%s1] sm:$0x3]
        %v179 = vld [vmem:[%s157] sm:$0x3]
        %v180 = vadd.f32 %v179, %v178
        %v181 = vlaneseq
        %vm182 = vcmp.ge.s32.totalorder %v181, 0
        %vm183 = vcmp.lt.s32.totalorder %v181, 256
        %vm184 = vmand %vm182, %vm183
        %185 = vst.msk [vmem:[%s177] sm:$0x3] %vm184, %v180
        %s186 = sand.u32 %s90, 1
        %s187 = scalar_lea.sflag [#allocation4], %s186
        %s188 = sand.u32 %s90, 1
        %s189 = smul.addr %s188, 2
        %s190 = scalar_lea.vmem [#allocation5], %s189
        // Predicated region
        $region33: #{tpu_custom_call.1} parent=27 // pred_check
          %p191 = pneg %p100
        $region34: #{tpu_custom_call.1} parent=27 // pred_check_branch
          %193 = sbr.rel (%p191) target = $region36
        $region35: #{tpu_custom_call.1} parent=27 // pred_region
          %s195 = ssub.s32 32, 32
          %196 = vsyncadd %s187, %s195
          %s197 = smul.addr %s23, 2
          %s198 = smul.addr %s24, 2
          %s199 = sadd.s32 %s197, %s198
          %s200 = smul.addr %s199, 16
          %s201 = scalar_lea.hbm %s2, %s200
          %s203 = sshll.u32 %s190, 4
          %s204 = int_to_ptr.vmem [resolvable:$true] %s203
          %206 = dma.vmem_to_hbm [thread:$0]  %s204, 32, %s201, %s187
        $region36: #{tpu_custom_call.1} parent=27 // pred_fallthru
          _
      $region28: #{tpu_custom_call.1} parent=5 // pred_fallthru
        _
      %p207 = scmp.le.s32.totalorder 2, %s14
      // Predicated region
      $region37: #{tpu_custom_call.1} parent=5 // pred_check
        %p208 = pneg %p207
      $region38: #{tpu_custom_call.1} parent=5 // pred_check_branch
        %210 = sbr.rel (%p208) target = $region40
      $region39: #{tpu_custom_call.1} parent=5 // pred_region
        %s211 = ssub.s32 %s14, 2
        // Predicated region
        $region41: #{tpu_custom_call.1} parent=39 // pred_check
          %p212 = pneg %p106
        $region42: #{tpu_custom_call.1} parent=39 // pred_check_branch
          %214 = sbr.rel (%p212) target = $region44
        $region43: #{tpu_custom_call.1} parent=39 // pred_region
          %s215 = sand.u32 %s91, 1
          %s216 = scalar_lea.sflag [#allocation4], %s215
          %s217 = sand.u32 %s91, 1
          %s218 = smul.addr %s217, 2
          %s219 = scalar_lea.vmem [#allocation5], %s218
          %220 = dma.done %s216, 32
        $region44: #{tpu_custom_call.1} parent=39 // pred_fallthru
          _
      $region40: #{tpu_custom_call.1} parent=5 // pred_fallthru
        _
    $region6: #{tpu_custom_call.1} parent=1 // loop_footer
      %s18 = sadd.s32 1, %s14
    $region7: #{tpu_custom_call.1} parent=1 // loop_footer_branch
      %13 = sbr.rel target = $region3
    $region8: #{tpu_custom_call.1} parent=1 // loop_exit
      _
    %221 = vsyncpa [#allocation3], 1
    %s222 = scalar_lea.sflag [#allocation3], 1
    %223 = vsyncpa %s222, 1
    %224 = vsyncpa [#allocation4], 1
    %s225 = scalar_lea.sflag [#allocation4], 1
    %226 = vsyncpa %s225, 1

</llo_original>
